<compile_context>
chip_gen: v6e
topology: v6e:2x2x1
jax: 0.10.0
libtpu: 0.0.40
codegen_flags: <defaults>
</compile_context>

<pallas_src>
import jax
import jax.numpy as jnp
from jax.experimental import pallas as pl
from jax.experimental.pallas import tpu as pltpu


def ssl_extractor_kernel(x_ref, w_ref, b_ref, o_ref):
    # x_ref: (TB, F) streamed batch tile
    # w_ref: (F, 4)  VMEM-resident weight (= W^T of PyTorch's (4, 3*T))
    # b_ref: (4, 1)  VMEM-resident bias
    # o_ref: (4, TB) lane-dense transposed output block
    logits = jnp.dot(x_ref[...], w_ref[...],
                     preferred_element_type=jnp.float32)       # (TB, 4) on MXU
    # Repack only the tiny logits to the lane-dense (4, TB) layout; x itself
    # is never transposed.
    lt = logits.T + b_ref[...]                                  # (4, TB)
    # TODO(synk): nn.Dropout(0.5) is identity in eval mode; training-mode
    # random masking/scaling is intentionally not reproduced here.
    m = jnp.max(lt, axis=0, keepdims=True)                      # (1, TB)
    e = jnp.exp(lt - m)
    denom = jnp.sum(e, axis=0, keepdims=True)                   # (1, TB)
    o_ref[...] = (e / denom).astype(o_ref.dtype)                # exact divide


def _round_up(n, m):
    return ((n + m - 1) // m) * m


def ssl_extractor_forward(x, w, b, *, block_b=16384):
    """x: (B, 3, T) float32; w: (3*T, 4) (= W^T of PyTorch's (4, 3*T)); b: (4,).

    Returns (B, 4) softmax probabilities.
    """
    B = x.shape[0]
    F = x.shape[1] * x.shape[2]
    x_flat = x.reshape(B, F)            # nn.Flatten (row-major, same as PyTorch)
    b2 = b.reshape(4, 1)

    # Batch tile: large enough to amortize per-grid-step overhead, shrunk for
    # small batches; a multiple of 128 so the transposed (4, TB) output block
    # is lane-aligned.
    TB = min(block_b, _round_up(B, 128))
    TB = _round_up(TB, 128)
    Bp = _round_up(B, TB)
    if Bp != B:
        # Padded rows produce bias-only softmax garbage; sliced off below.
        x_flat = jnp.pad(x_flat, ((0, Bp - B), (0, 0)))

    out_t = pl.pallas_call(
        ssl_extractor_kernel,
        out_shape=jax.ShapeDtypeStruct((4, Bp), jnp.float32),
        grid_spec=pltpu.PrefetchScalarGridSpec(
            num_scalar_prefetch=0,
            grid=(Bp // TB,),
            in_specs=[
                pl.BlockSpec((TB, F), lambda i: (i, 0)),   # streamed x tiles
                pl.BlockSpec((F, 4), lambda i: (0, 0)),    # weight: VMEM-resident
                pl.BlockSpec((4, 1), lambda i: (0, 0)),    # bias:   VMEM-resident
            ],
            out_specs=pl.BlockSpec((4, TB), lambda i: (0, i)),  # lane-dense
        ),
        compiler_params=pltpu.CompilerParams(
            dimension_semantics=("parallel",),
            vmem_limit_bytes=32 * 1024 * 1024,
        ),
    )(x_flat, w, b2)

    # Drop padded columns, then transpose the tiny (4, B) result back to the
    # module's (B, 4) layout.
    return out_t[:, :B].T


if __name__ == "__main__":
    # Small shapes consistent with the module: temporal_len=16, 3 "channels".
    B, C, T = 2, 3, 16
    F = C * T  # temporal_len * 3 = 48

    key = jax.random.PRNGKey(0)
    kx, kw, kb = jax.random.split(key, 3)

    x = jax.random.normal(kx, (B, C, T), dtype=jnp.float32)
    # Deterministic Linear params (synthetic init, Kaiming-uniform-like scale).
    bound = 1.0 / jnp.sqrt(jnp.float32(F))
    w = jax.random.uniform(kw, (F, 4), jnp.float32, -bound, bound)  # = W^T
    b = jax.random.uniform(kb, (4,), jnp.float32, -bound, bound)

    out = ssl_extractor_forward(x, w, b)
    out = jax.block_until_ready(out)

    # Sanity check against plain-JAX reference (exact divide -> tight tol).
    ref = jax.nn.softmax(x.reshape(B, F) @ w + b, axis=1)
    assert out.shape == (B, 4)
    assert jnp.allclose(out, ref, atol=1e-5, rtol=1e-5), "mismatch vs reference"
    assert jnp.allclose(jnp.sum(out, axis=1), 1.0, atol=1e-5)

    # Exercise the multi-step batch grid + tail padding path: B not a multiple
    # of the block size and more than one grid step.
    B2 = 300
    x2 = jax.random.normal(jax.random.PRNGKey(1), (B2, C, T), dtype=jnp.float32)
    out2 = jax.block_until_ready(ssl_extractor_forward(x2, w, b, block_b=128))
    ref2 = jax.nn.softmax(x2.reshape(B2, F) @ w + b, axis=1)
    assert out2.shape == (B2, 4)
    assert jnp.allclose(out2, ref2, atol=1e-5, rtol=1e-5), \
        "mismatch vs reference (tiled path)"

    print("KERNEL_OK")
</pallas_src>

<mosaic_0001>
module attributes {stable_mosaic.version = 11 : i64} {
  func.func @ssl_extractor_kernel(%arg0: i32, %arg1: memref<128x48xf32, #tpu.memory_space<vmem>>, %arg2: memref<48x4xf32, #tpu.memory_space<vmem>>, %arg3: memref<4x1xf32, #tpu.memory_space<vmem>>, %arg4: memref<4x128xf32, #tpu.memory_space<vmem>>) attributes {dimension_semantics = [#tpu.dimension_semantics<parallel>], iteration_bounds = array<i64: 1>, scalar_prefetch = 0 : i64, scratch_operands = 0 : i64, tpu.core_type = #tpu.core_type<tc>, window_params = [{transform_indices = @transform_0, window_bounds = array<i64: 128, 48>}, {pipeline_mode = #tpu.pipeline_mode<synchronous>, transform_indices = @transform_1, window_bounds = array<i64: 48, 4>}, {pipeline_mode = #tpu.pipeline_mode<synchronous>, transform_indices = @transform_2, window_bounds = array<i64: 4, 1>}, {transform_indices = @transform_3, window_bounds = array<i64: 4, 128>}]} {
    %c0 = arith.constant 0 : index
    %c0_0 = arith.constant 0 : index
    %0 = vector.load %arg1[%c0, %c0_0] : memref<128x48xf32, #tpu.memory_space<vmem>>, vector<128x48xf32>
    %c0_1 = arith.constant 0 : index
    %c0_2 = arith.constant 0 : index
    %1 = vector.load %arg2[%c0_1, %c0_2] : memref<48x4xf32, #tpu.memory_space<vmem>>, vector<48x4xf32>
    %cst = arith.constant dense<0.000000e+00> : vector<128x4xf32>
    %2 = tpu.matmul %0, %1, %cst {dimension_numbers = #tpu.dot_dimension_numbers<[1], [0], [0], [1], [0, 0, 1, 1], [], []>} : vector<128x48xf32>, vector<48x4xf32>, vector<128x4xf32> -> vector<128x4xf32>
    %3 = tpu.transpose %2, [1, 0] : vector<128x4xf32> -> vector<4x128xf32>
    %c0_3 = arith.constant 0 : index
    %c0_4 = arith.constant 0 : index
    %4 = vector.load %arg3[%c0_3, %c0_4] : memref<4x1xf32, #tpu.memory_space<vmem>>, vector<4x1xf32>
    %5 = vector.broadcast %4 : vector<4x1xf32> to vector<4x128xf32>
    %6 = arith.addf %3, %5 : vector<4x128xf32>
    %cst_5 = arith.constant dense<0xFF800000> : vector<128xf32>
    %7 = vector.multi_reduction <maximumf>, %6, %cst_5 [0] : vector<4x128xf32> to vector<128xf32>
    %8 = vector.shape_cast %7 : vector<128xf32> to vector<1x128xf32>
    %9 = vector.broadcast %8 : vector<1x128xf32> to vector<4x128xf32>
    %10 = arith.subf %6, %9 : vector<4x128xf32>
    %11 = math.exp %10 : vector<4x128xf32>
    %cst_6 = arith.constant dense<0.000000e+00> : vector<128xf32>
    %12 = vector.multi_reduction <add>, %11, %cst_6 [0] : vector<4x128xf32> to vector<128xf32>
    %13 = vector.shape_cast %12 : vector<128xf32> to vector<1x128xf32>
    %14 = vector.broadcast %13 : vector<1x128xf32> to vector<4x128xf32>
    %15 = arith.divf %11, %14 : vector<4x128xf32>
    %c0_7 = arith.constant 0 : index
    %c0_8 = arith.constant 0 : index
    %16 = vector.load %arg4[%c0_7, %c0_8] : memref<4x128xf32, #tpu.memory_space<vmem>>, vector<4x128xf32>
    tpu.vector_store %arg4[%c0_7, %c0_8], %15 {strides = array<i32>} : memref<4x128xf32, #tpu.memory_space<vmem>>, vector<4x128xf32>,
    return
  }
  func.func @transform_0(%arg0: i32) -> (i32, i32) {
    %c0_i32 = arith.constant 0 : i32
    %c0_i32_0 = arith.constant 0 : i32
    return %arg0, %c0_i32 : i32, i32
  }
  func.func @transform_1(%arg0: i32) -> (i32, i32) {
    %c0_i32 = arith.constant 0 : i32
    %c0_i32_0 = arith.constant 0 : i32
    %c0_i32_1 = arith.constant 0 : i32
    return %c0_i32, %c0_i32_0 : i32, i32
  }
  func.func @transform_2(%arg0: i32) -> (i32, i32) {
    %c0_i32 = arith.constant 0 : i32
    %c0_i32_0 = arith.constant 0 : i32
    %c0_i32_1 = arith.constant 0 : i32
    return %c0_i32, %c0_i32_0 : i32, i32
  }
  func.func @transform_3(%arg0: i32) -> (i32, i32) {
    %c0_i32 = arith.constant 0 : i32
    %c0_i32_0 = arith.constant 0 : i32
    return %c0_i32, %arg0 : i32, i32
  }
}

</mosaic_0001>

<llo_original>
// kernel: tpu_custom_call.1
$region0: #{tpu_custom_call.1}
  #allocation0 [shape = 'u32[]', space=smem, size = 0x4, offset = 0x4, fixed_abs, tag = 'smem constant byte address 0x4 - core index']
  #allocation1 [shape = 'u32[144,128]{1,0:T(1,128)}', space=vmem, size = 0x12000, scoped, tag = 'internal scratch']
  %s0 = inlined_call_operand.vmem [shape: f32[128,48], index: 0, kind: input, shape index: {}]
  %s1 = inlined_call_operand.vmem [shape: f32[48,4], index: 1, kind: input, shape index: {}]
  %s2 = inlined_call_operand.vmem [shape: f32[4,1], index: 2, kind: input, shape index: {}]
  %s3 = inlined_call_operand.hbm [shape: f32[4,128], index: 3, kind: output, shape index: {}]
  %s4 = sld [smem:[#allocation0]]
  $region22: #{tpu_custom_call.1} parent=0
    _
  %s6 = ssub.s32 1, %s4
  %s7 = scalar_select 0, %s6, %s4
  $region1: #{tpu_custom_call.1} parent=0
    #allocation2 [shape = 'u8[2048]{0}', space=vmem, size = 0x800, scoped, tag = 'output window, operand 0, single buffered']
    #allocation3 [shape = 's32[1]{0}', space=sflag, size = 0x4, scoped, tag = 'scoped memory for tpu_custom_call.1']
    %8 = vsyncpa [#allocation3], 0
    // Predicated region
    $region2: #{tpu_custom_call.1} parent=1 // pred_check
      _
    $region3: #{tpu_custom_call.1} parent=1 // pred_check_branch
      %10 = sbr.rel (0) target = $region5
    $region4: #{tpu_custom_call.1} parent=1 // pred_region
      _
    $region5: #{tpu_custom_call.1} parent=1 // pred_fallthru
      _
    // Predicated region
    $region6: #{tpu_custom_call.1} parent=1 // pred_check
      _
    $region7: #{tpu_custom_call.1} parent=1 // pred_check_branch
      %12 = sbr.rel (0) target = $region9
    $region8: #{tpu_custom_call.1} parent=1 // pred_region
      _
    $region9: #{tpu_custom_call.1} parent=1 // pred_fallthru
      _
    // Predicated region
    $region10: #{tpu_custom_call.1} parent=1 // pred_check
      _
    $region11: #{tpu_custom_call.1} parent=1 // pred_check_branch
      %14 = sbr.rel (0) target = $region13
    $region12: #{tpu_custom_call.1} parent=1 // pred_region
      _
    $region13: #{tpu_custom_call.1} parent=1 // pred_fallthru
      _
    %v15 = vld [vmem:[%s0] sm:$0xff]
    %v16 = vld [vmem:[%s0 + $0x8] sm:$0xff]
    %v17 = vld [vmem:[%s0 + $0x10] sm:$0xff]
    %v18 = vld [vmem:[%s0 + $0x18] sm:$0xff]
    %v19 = vld [vmem:[%s0 + $0x20] sm:$0xff]
    %v20 = vld [vmem:[%s0 + $0x28] sm:$0xff]
    %v21 = vld [vmem:[%s0 + $0x30] sm:$0xff]
    %v22 = vld [vmem:[%s0 + $0x38] sm:$0xff]
    %v23 = vld [vmem:[%s0 + $0x40] sm:$0xff]
    %v24 = vld [vmem:[%s0 + $0x48] sm:$0xff]
    %v25 = vld [vmem:[%s0 + $0x50] sm:$0xff]
    %v26 = vld [vmem:[%s0 + $0x58] sm:$0xff]
    %v27 = vld [vmem:[%s0 + $0x60] sm:$0xff]
    %v28 = vld [vmem:[%s0 + $0x68] sm:$0xff]
    %v29 = vld [vmem:[%s0 + $0x70] sm:$0xff]
    %v30 = vld [vmem:[%s0 + $0x78] sm:$0xff]
    %v31 = vld [vmem:[%s1] sm:$0xff]
    %v32 = vld [vmem:[%s1 + $0x8] sm:$0xff]
    %v33 = vld [vmem:[%s1 + $0x10] sm:$0xff]
    %v34 = vld [vmem:[%s1 + $0x18] sm:$0xff]
    %v35 = vld [vmem:[%s1 + $0x20] sm:$0xff]
    %v36 = vld [vmem:[%s1 + $0x28] sm:$0xff]
    %vm37 = vcmask 392192
    %v39 = vsel %vm37, %v15, 0
    %v42 = vsel %vm37, %v16, 0
    %v45 = vsel %vm37, %v17, 0
    %v48 = vsel %vm37, %v18, 0
    %v51 = vsel %vm37, %v19, 0
    %v54 = vsel %vm37, %v20, 0
    %v57 = vsel %vm37, %v21, 0
    %v60 = vsel %vm37, %v22, 0
    %v63 = vsel %vm37, %v23, 0
    %v66 = vsel %vm37, %v24, 0
    %v69 = vsel %vm37, %v25, 0
    %v72 = vsel %vm37, %v26, 0
    %v75 = vsel %vm37, %v27, 0
    %v78 = vsel %vm37, %v28, 0
    %v81 = vsel %vm37, %v29, 0
    %v84 = vsel %vm37, %v30, 0
    %86 = vmatprep.subr.mxu0 0.0
    %87 = vmatpush1.msra.mxu0 0.0
    %88 = vmatprep.subr.mxu0 0.0
    %89 = vmatpush1.msra.mxu0 0.0
    %90 = vmatprep.subr.mxu0 0.0
    %91 = vmatpush1.msra.mxu0 0.0
    %92 = vmatprep.subr.mxu0 0.0
    %93 = vmatpush1.msra.mxu0 0.0
    %94 = vmatprep.subr.mxu0 0.0
    %95 = vmatpush1.msra.mxu0 0.0
    %96 = vmatprep.subr.mxu0 0.0
    %97 = vmatpush1.msra.mxu0 0.0
    %98 = vmatprep.subr.mxu0 0.0
    %99 = vmatpush1.msra.mxu0 0.0
    %100 = vmatprep.subr.mxu0 0.0
    %101 = vmatpush1.msra.mxu0 0.0
    %102 = vmatprep.subr.mxu0 0.0
    %103 = vmatpush1.msra.mxu0 0.0
    %104 = vmatprep.subr.mxu0 0.0
    %105 = vmatpush1.msra.mxu0 0.0
    %106 = vmatprep.subr.mxu0 0.0
    %107 = vmatpush1.msra.mxu0 %v36
    %108 = vmatprep.subr.mxu0 0.0
    %109 = vmatpush1.msra.mxu0 %v35
    %110 = vmatprep.subr.mxu0 0.0
    %111 = vmatpush1.msra.mxu0 %v34
    %112 = vmatprep.subr.mxu0 0.0
    %113 = vmatpush1.msra.mxu0 %v33
    %114 = vmatprep.subr.mxu0 0.0
    %115 = vmatpush1.msra.mxu0 %v32
    %116 = vmatprep.subr.mxu0 0.0
    %117 = vmatpush1.msra.mxu0 %v31
    %118 = vmatprep.subr.mxu0 0.0
    %119 = vmatpush2.msra.mxu0 0.0
    %120 = vmatprep.subr.mxu0 0.0
    %121 = vmatpush2.msra.mxu0 0.0
    %122 = vmatprep.subr.mxu0 0.0
    %123 = vmatpush2.msra.mxu0 0.0
    %124 = vmatprep.subr.mxu0 0.0
    %125 = vmatpush2.msra.mxu0 0.0
    %126 = vmatprep.subr.mxu0 0.0
    %127 = vmatpush2.msra.mxu0 0.0
    %128 = vmatprep.subr.mxu0 0.0
    %129 = vmatpush2.msra.mxu0 0.0
    %130 = vmatprep.subr.mxu0 0.0
    %131 = vmatpush2.msra.mxu0 0.0
    %132 = vmatprep.subr.mxu0 0.0
    %133 = vmatpush2.msra.mxu0 0.0
    %134 = vmatprep.subr.mxu0 0.0
    %135 = vmatpush2.msra.mxu0 0.0
    %136 = vmatprep.subr.mxu0 0.0
    %137 = vmatpush2.msra.mxu0 0.0
    %138 = vmatprep.subr.mxu0 0.0
    %139 = vmatpush2.msra.mxu0 0.0
    %140 = vmatprep.subr.mxu0 0.0
    %141 = vmatpush2.msra.mxu0 0.0
    %142 = vmatprep.subr.mxu0 0.0
    %143 = vmatpush2.msra.mxu0 0.0
    %144 = vmatprep.subr.mxu0 0.0
    %145 = vmatpush2.msra.mxu0 0.0
    %146 = vmatprep.subr.mxu0 0.0
    %147 = vmatpush2.msra.mxu0 0.0
    %148 = vmatprep.subr.mxu0 0.0
    %149 = vmatpush2.msra.mxu0 0.0
    %150 = vmatprep.mubr.f32.mxu0 0.0
    %151 = vmatmul.mubr.f32.gmra.mxu0 %v39
    %v152 = vpop.f32.mrf.mxu0
    %v153 = vadd.f32 0.0, %v152
    %v154 = vpop.f32.mrf.mxu0
    %155 = vmatprep.mubr.f32.mxu0 0.0
    %156 = vmatmul.mubr.f32.gmra.mxu0 %v42
    %v157 = vpop.f32.mrf.mxu0
    %v158 = vadd.f32 0.0, %v157
    %v159 = vpop.f32.mrf.mxu0
    %160 = vmatprep.mubr.f32.mxu0 0.0
    %161 = vmatmul.mubr.f32.gmra.mxu0 %v45
    %v162 = vpop.f32.mrf.mxu0
    %v163 = vadd.f32 0.0, %v162
    %v164 = vpop.f32.mrf.mxu0
    %165 = vmatprep.mubr.f32.mxu0 0.0
    %166 = vmatmul.mubr.f32.gmra.mxu0 %v48
    %v167 = vpop.f32.mrf.mxu0
    %v168 = vadd.f32 0.0, %v167
    %v169 = vpop.f32.mrf.mxu0
    %170 = vmatprep.mubr.f32.mxu0 0.0
    %171 = vmatmul.mubr.f32.gmra.mxu0 %v51
    %v172 = vpop.f32.mrf.mxu0
    %v173 = vadd.f32 0.0, %v172
    %v174 = vpop.f32.mrf.mxu0
    %175 = vmatprep.mubr.f32.mxu0 0.0
    %176 = vmatmul.mubr.f32.gmra.mxu0 %v54
    %v177 = vpop.f32.mrf.mxu0
    %v178 = vadd.f32 0.0, %v177
    %v179 = vpop.f32.mrf.mxu0
    %180 = vmatprep.mubr.f32.mxu0 0.0
    %181 = vmatmul.mubr.f32.gmra.mxu0 %v57
    %v182 = vpop.f32.mrf.mxu0
    %v183 = vadd.f32 0.0, %v182
    %v184 = vpop.f32.mrf.mxu0
    %185 = vmatprep.mubr.f32.mxu0 0.0
    %186 = vmatmul.mubr.f32.gmra.mxu0 %v60
    %v187 = vpop.f32.mrf.mxu0
    %v188 = vadd.f32 0.0, %v187
    %v189 = vpop.f32.mrf.mxu0
    %190 = vmatprep.mubr.f32.mxu0 0.0
    %191 = vmatmul.mubr.f32.gmra.mxu0 %v63
    %v192 = vpop.f32.mrf.mxu0
    %v193 = vadd.f32 0.0, %v192
    %v194 = vpop.f32.mrf.mxu0
    %195 = vmatprep.mubr.f32.mxu0 0.0
    %196 = vmatmul.mubr.f32.gmra.mxu0 %v66
    %v197 = vpop.f32.mrf.mxu0
    %v198 = vadd.f32 0.0, %v197
    %v199 = vpop.f32.mrf.mxu0
    %200 = vmatprep.mubr.f32.mxu0 0.0
    %201 = vmatmul.mubr.f32.gmra.mxu0 %v69
    %v202 = vpop.f32.mrf.mxu0
    %v203 = vadd.f32 0.0, %v202
    %v204 = vpop.f32.mrf.mxu0
    %205 = vmatprep.mubr.f32.mxu0 0.0
    %206 = vmatmul.mubr.f32.gmra.mxu0 %v72
    %v207 = vpop.f32.mrf.mxu0
    %v208 = vadd.f32 0.0, %v207
    %v209 = vpop.f32.mrf.mxu0
    %210 = vmatprep.mubr.f32.mxu0 0.0
    %211 = vmatmul.mubr.f32.gmra.mxu0 %v75
    %v212 = vpop.f32.mrf.mxu0
    %v213 = vadd.f32 0.0, %v212
    %v214 = vpop.f32.mrf.mxu0
    %215 = vmatprep.mubr.f32.mxu0 0.0
    %216 = vmatmul.mubr.f32.gmra.mxu0 %v78
    %v217 = vpop.f32.mrf.mxu0
    %v218 = vadd.f32 0.0, %v217
    %v219 = vpop.f32.mrf.mxu0
    %220 = vmatprep.mubr.f32.mxu0 0.0
    %221 = vmatmul.mubr.f32.gmra.mxu0 %v81
    %v222 = vpop.f32.mrf.mxu0
    %v223 = vadd.f32 0.0, %v222
    %v224 = vpop.f32.mrf.mxu0
    %225 = vmatprep.mubr.f32.mxu0 0.0
    %226 = vmatmul.mubr.f32.gmra.mxu0 %v84
    %v227 = vpop.f32.mrf.mxu0
    %v228 = vadd.f32 0.0, %v227
    %v229 = vpop.f32.mrf.mxu0
    %230 = vdwg.mxu0
    %231 = vxpose.xlu0.b32.start [1/16] %v153, 128
    %232 = vxpose.xlu0.b32.cont [2/16] %v158, 128
    %233 = vxpose.xlu0.b32.cont [3/16] %v163, 128
    %234 = vxpose.xlu0.b32.cont [4/16] %v168, 128
    %235 = vxpose.xlu0.b32.cont [5/16] %v173, 128
    %236 = vxpose.xlu0.b32.cont [6/16] %v178, 128
    %237 = vxpose.xlu0.b32.cont [7/16] %v183, 128
    %238 = vxpose.xlu0.b32.cont [8/16] %v188, 128
    %239 = vxpose.xlu0.b32.cont [9/16] %v193, 128
    %240 = vxpose.xlu0.b32.cont [10/16] %v198, 128
    %241 = vxpose.xlu0.b32.cont [11/16] %v203, 128
    %242 = vxpose.xlu0.b32.cont [12/16] %v208, 128
    %243 = vxpose.xlu0.b32.cont [13/16] %v213, 128
    %244 = vxpose.xlu0.b32.cont [14/16] %v218, 128
    %245 = vxpose.xlu0.b32.cont [15/16] %v223, 128
    %246 = vxpose.xlu0.b32.end [16/16] %v228, 128
    %v247 = vpop.trf.xlu0
    %v248 = vpop.trf.xlu0
    %v249 = vpop.trf.xlu0
    %v250 = vpop.trf.xlu0
    %v251 = vpop.trf.xlu0
    %v252 = vpop.trf.xlu0
    %v253 = vpop.trf.xlu0
    %v254 = vpop.trf.xlu0
    %v255 = vpop.trf.xlu0
    %v256 = vpop.trf.xlu0
    %v257 = vpop.trf.xlu0
    %v258 = vpop.trf.xlu0
    %v259 = vpop.trf.xlu0
    %v260 = vpop.trf.xlu0
    %v261 = vpop.trf.xlu0
    %v262 = vpop.trf.xlu0
    %v263 = vld [vmem:[%s2] sm:$0xf]
    %265 = vset.pattern.permute.xlu0 0
    %266 = vperm.xlu0 %265, %v263
    %v267 = vpop.permute.xlu0 %266
    %v269 = vadd.f32 %v247, %v267
    %vm270 = vcmask 1043456
    %v271 = vsel %vm270, %v269, -inf
    %v272 = vrot.slane %v271, 4
    %v273 = vmax.f32 %v271, %v272
    %v274 = vrot.slane %v273, 2
    %v275 = vmax.f32 %v273, %v274
    %v276 = vrot.slane %v275, 1
    %v277 = vmax.f32 %v275, %v276
    %v278 = vsub.f32 %v269, %v277
    %v279 = vmul.f32 %v278, 1.442695
    %v280 = vpow.pop %v279
    %v281 = vsel %vm270, %v280, 0.0
    %v282 = vrot.slane %v281, 4
    %v283 = vadd.f32 %v281, %v282
    %v284 = vrot.slane %v283, 2
    %v285 = vadd.f32 %v283, %v284
    %v286 = vrot.slane %v285, 1
    %v287 = vadd.f32 %v285, %v286
    %v288 = vrcp.pop %v287
    %v289 = vmul.f32 %v280, %v288
    %290 = vst [vmem:[#allocation2] sm:$0xf] %v289
    // Predicated region
    $region14: #{tpu_custom_call.1} parent=1 // pred_check
      _
    $region15: #{tpu_custom_call.1} parent=1 // pred_check_branch
      %292 = sbr.rel (0) target = $region17
    $region16: #{tpu_custom_call.1} parent=1 // pred_region
      %s294 = ssub.s32 64, 64
      %295 = vsyncadd [#allocation3], %s294
      %s297 = sshll.u32 [#allocation2], 4
      %s298 = int_to_ptr.vmem [resolvable:$true] %s297
      %300 = dma.vmem_to_hbm [thread:$0]  %s298, 64, %s3, [#allocation3]
    $region17: #{tpu_custom_call.1} parent=1 // pred_fallthru
      _
    // Predicated region
    $region18: #{tpu_custom_call.1} parent=1 // pred_check
      _
    $region19: #{tpu_custom_call.1} parent=1 // pred_check_branch
      %302 = sbr.rel (0) target = $region21
    $region20: #{tpu_custom_call.1} parent=1 // pred_region
      %303 = dma.done [#allocation3], 64
    $region21: #{tpu_custom_call.1} parent=1 // pred_fallthru
      _
    %304 = vsyncpa [#allocation3], 1

</llo_original>
